<compile_context>
chip_gen: v7x
topology: tpu7x:2x2x1
jax: 0.10.0
libtpu: 0.0.40
codegen_flags: <defaults>
</compile_context>

<pallas_src>
import jax
import jax.numpy as jnp
from jax.experimental import pallas as pl
from jax.experimental.pallas import tpu as pltpu

IMG_HW = 16        # original module uses 128; reduced for the small demo
RGB_C = 3
D = IMG_HW * IMG_HW  # Linear in/out features


def _select_tiles(K, N):
    """Pick (tn, tk, vmem_limit_bytes) per TPU generation (VMEM capacity)."""
    try:
        vmem_cap = pltpu.get_tpu_info().vmem_capacity_bytes
    except Exception:
        vmem_cap = 64 * 1024 * 1024            # conservative (v7x-sized) fallback
    if vmem_cap >= 100 * 1024 * 1024:          # v5e / v6e: 128 MiB physical
        tn, tk = 8192, 2048                    # 32 MiB bf16 tile, 64 MiB double-buffered
        limit = 100 * 1024 * 1024
    else:                                      # v7x: 64 MiB physical
        tn, tk = 8192, 1024                    # 16 MiB bf16 tile, 32 MiB double-buffered
        limit = 48 * 1024 * 1024
    return min(tn, N), min(tk, K), limit


# ----------------------------- Pallas linear --------------------------------
def linear_pallas(x, w_t_bf16, b, *, tn=None, tk=None, vmem_limit_bytes=None):
    """y = x @ W^T + b.

    x:        (M, K) float32 activations (M is small: batch*RGB_C rows).
    w_t_bf16: (K, N) weight in bfloat16, pre-transposed from PyTorch's
              (out, in) layout and pre-cast once at init time.
    b:        (N,)   float32 bias.
    Returns (M, N) float32.
    """
    M, K = x.shape
    N = w_t_bf16.shape[1]

    auto_tn, auto_tk, auto_limit = _select_tiles(K, N)
    tn = auto_tn if tn is None else min(tn, N)
    tk = auto_tk if tk is None else min(tk, K)
    vmem_limit_bytes = auto_limit if vmem_limit_bytes is None else vmem_limit_bytes
    assert K % tk == 0 and N % tn == 0, "feature dims must tile evenly"

    # Pad rows to a sublane multiple (8) so x / out blocks are aligned and
    # output stores are unmasked.
    m_pad = -M % 8
    if m_pad:
        x = jnp.pad(x, ((0, m_pad), (0, 0)))
    Mp = M + m_pad

    # Only the small activation is cast per call; the big weight is already bf16.
    x_bf = x.astype(jnp.bfloat16)
    b2 = b.reshape(1, N).astype(jnp.float32)

    n_k = K // tk

    def kernel(x_ref, w_ref, b_ref, o_ref):
        k = pl.program_id(1)

        # Output block index is K-invariant -> o_ref is the VMEM-resident
        # f32 accumulator; no separate scratch needed.
        @pl.when(k == 0)
        def _():
            o_ref[...] = jnp.zeros_like(o_ref)

        o_ref[...] += jnp.dot(x_ref[...], w_ref[...],
                              preferred_element_type=jnp.float32)

        @pl.when(k == n_k - 1)
        def _():
            o_ref[...] += b_ref[...]

    out = pl.pallas_call(
        kernel,
        out_shape=jax.ShapeDtypeStruct((Mp, N), jnp.float32),
        grid_spec=pltpu.PrefetchScalarGridSpec(
            num_scalar_prefetch=0,
            grid=(N // tn, n_k),                       # (N tiles, K tiles)
            in_specs=[
                # Activation K-chunk (tiny, Mp rows), delivered directly.
                pl.BlockSpec((Mp, tk), lambda j, k: (0, k)),
                # Weight tile (bf16), streamed from HBM, double-buffered.
                # Wide tn / shallow tk -> long contiguous HBM bursts per row.
                pl.BlockSpec((tk, tn), lambda j, k: (k, j)),
                # Bias tile (only changes when the output tile changes).
                pl.BlockSpec((1, tn), lambda j, k: (0, j)),
            ],
            out_specs=pl.BlockSpec((Mp, tn), lambda j, k: (0, j)),
        ),
        compiler_params=pltpu.CompilerParams(
            # N axis parallel (shards across v7x's two TensorCores),
            # K axis is the reduction -> arbitrary, innermost.
            dimension_semantics=("parallel", "arbitrary"),
            vmem_limit_bytes=vmem_limit_bytes,
        ),
    )(x_bf, w_t_bf16, b2)

    return out[:M] if m_pad else out


# ----------------------------- wrapper model --------------------------------
def wrapper_model_forward(in_data, params):
    """in_data: (batch*RGB_C, D) float32 -> (batch, RGB_C, IMG_HW, IMG_HW)."""
    linear_out = linear_pallas(in_data, params["w_t"], params["b"])
    nchw = linear_out.reshape(-1, RGB_C, IMG_HW, IMG_HW)
    # TODO(synk): `loaded_model` is an external, unspecified nn.Module; its
    # application is left as identity here.
    final = nchw
    return final


def init_params(key):
    kw, kb = jax.random.split(key)
    # Match torch.nn.Linear init (uniform in +/- 1/sqrt(fan_in)) deterministically.
    bound = 1.0 / jnp.sqrt(jnp.float32(D))
    w = jax.random.uniform(kw, (D, D), jnp.float32, -bound, bound)   # (out, in)
    b = jax.random.uniform(kb, (D,), jnp.float32, -bound, bound)
    # Pre-transpose so the kernel does x @ W^T, and pre-cast the big weight to
    # bf16 once here (removes a per-forward HBM cast pass of the full weight).
    return {"w_t": w.T.astype(jnp.bfloat16), "b": b}


if __name__ == "__main__":
    key = jax.random.PRNGKey(0)
    k_in, k_par = jax.random.split(key)

    batch = 2
    # in_data rows flatten (batch, RGB_C) so the post-linear reshape to
    # (-1, RGB_C, IMG_HW, IMG_HW) yields `batch` images.
    in_data = jax.random.normal(k_in, (batch * RGB_C, D), jnp.float32)
    params = init_params(k_par)

    out = wrapper_model_forward(in_data, params)
    out = jax.block_until_ready(out)

    # Cross-check the Pallas linear against plain JAX (same bf16 inputs,
    # f32 accumulation, matching the in-kernel precision).
    x_bf = in_data.astype(jnp.bfloat16).astype(jnp.float32)
    w_bf = params["w_t"].astype(jnp.float32)
    ref = (x_bf @ w_bf + params["b"]).reshape(-1, RGB_C, IMG_HW, IMG_HW)

    assert out.shape == (batch, RGB_C, IMG_HW, IMG_HW)
    assert jnp.allclose(out, ref, atol=1e-3, rtol=1e-3)

    print("KERNEL_OK")
</pallas_src>

<mosaic_0001>
module attributes {stable_mosaic.version = 11 : i64} {
  func.func @kernel(%arg0: i32, %arg1: i32, %arg2: memref<8x256xbf16, #tpu.memory_space<vmem>>, %arg3: memref<256x256xbf16, #tpu.memory_space<vmem>>, %arg4: memref<1x256xf32, #tpu.memory_space<vmem>>, %arg5: memref<8x256xf32, #tpu.memory_space<vmem>>) attributes {dimension_semantics = [#tpu.dimension_semantics<parallel>, #tpu.dimension_semantics<arbitrary>], iteration_bounds = array<i64: 1, 1>, scalar_prefetch = 0 : i64, scratch_operands = 0 : i64, tpu.core_type = #tpu.core_type<tc>, window_params = [{transform_indices = @transform_0, window_bounds = array<i64: 8, 256>}, {transform_indices = @transform_1, window_bounds = array<i64: 256, 256>}, {transform_indices = @transform_2, window_bounds = array<i64: 1, 256>}, {transform_indices = @transform_3, window_bounds = array<i64: 8, 256>}]} {
    %c0_i32 = arith.constant 0 : i32
    %0 = arith.cmpi eq, %arg1, %c0_i32 : i32
    %1 = arith.extui %0 : i1 to i32
    %c0_i32_0 = arith.constant 0 : i32
    %2 = arith.cmpi ne, %1, %c0_i32_0 : i32
    scf.if %2 {
      %cst_10 = arith.constant 0.000000e+00 : f32
      %12 = vector.broadcast %cst_10 : f32 to vector<8x256xf32>
      %c0_11 = arith.constant 0 : index
      %c0_12 = arith.constant 0 : index
      %13 = vector.load %arg5[%c0_11, %c0_12] : memref<8x256xf32, #tpu.memory_space<vmem>>, vector<8x256xf32>
      tpu.vector_store %arg5[%c0_11, %c0_12], %12 {strides = array<i32>} : memref<8x256xf32, #tpu.memory_space<vmem>>, vector<8x256xf32>,
    } else {
    }
    %c0 = arith.constant 0 : index
    %c0_1 = arith.constant 0 : index
    %3 = vector.load %arg5[%c0, %c0_1] : memref<8x256xf32, #tpu.memory_space<vmem>>, vector<8x256xf32>
    %c0_2 = arith.constant 0 : index
    %c0_3 = arith.constant 0 : index
    %4 = vector.load %arg2[%c0_2, %c0_3] : memref<8x256xbf16, #tpu.memory_space<vmem>>, vector<8x256xbf16>
    %c0_4 = arith.constant 0 : index
    %c0_5 = arith.constant 0 : index
    %5 = vector.load %arg3[%c0_4, %c0_5] : memref<256x256xbf16, #tpu.memory_space<vmem>>, vector<256x256xbf16>
    %cst = arith.constant dense<0.000000e+00> : vector<8x256xf32>
    %6 = tpu.matmul %4, %5, %cst {dimension_numbers = #tpu.dot_dimension_numbers<[1], [0], [0], [1], [0, 0, 1, 1], [], []>} : vector<8x256xbf16>, vector<256x256xbf16>, vector<8x256xf32> -> vector<8x256xf32>
    %7 = arith.addf %3, %6 : vector<8x256xf32>
    %c0_6 = arith.constant 0 : index
    %c0_7 = arith.constant 0 : index
    %8 = vector.load %arg5[%c0_6, %c0_7] : memref<8x256xf32, #tpu.memory_space<vmem>>, vector<8x256xf32>
    tpu.vector_store %arg5[%c0_6, %c0_7], %7 {strides = array<i32>} : memref<8x256xf32, #tpu.memory_space<vmem>>, vector<8x256xf32>,
    %c0_i32_8 = arith.constant 0 : i32
    %9 = arith.cmpi eq, %arg1, %c0_i32_8 : i32
    %10 = arith.extui %9 : i1 to i32
    %c0_i32_9 = arith.constant 0 : i32
    %11 = arith.cmpi ne, %10, %c0_i32_9 : i32
    scf.if %11 {
      %c0_10 = arith.constant 0 : index
      %c0_11 = arith.constant 0 : index
      %12 = vector.load %arg5[%c0_10, %c0_11] : memref<8x256xf32, #tpu.memory_space<vmem>>, vector<8x256xf32>
      %c0_12 = arith.constant 0 : index
      %c0_13 = arith.constant 0 : index
      %13 = vector.load %arg4[%c0_12, %c0_13] : memref<1x256xf32, #tpu.memory_space<vmem>>, vector<1x256xf32>
      %14 = vector.broadcast %13 : vector<1x256xf32> to vector<8x256xf32>
      %15 = arith.addf %12, %14 : vector<8x256xf32>
      %c0_14 = arith.constant 0 : index
      %c0_15 = arith.constant 0 : index
      %16 = vector.load %arg5[%c0_14, %c0_15] : memref<8x256xf32, #tpu.memory_space<vmem>>, vector<8x256xf32>
      tpu.vector_store %arg5[%c0_14, %c0_15], %15 {strides = array<i32>} : memref<8x256xf32, #tpu.memory_space<vmem>>, vector<8x256xf32>,
    } else {
    }
    return
  }
  func.func @transform_0(%arg0: i32, %arg1: i32) -> (i32, i32) {
    %c0_i32 = arith.constant 0 : i32
    %c0_i32_0 = arith.constant 0 : i32
    return %c0_i32, %arg1 : i32, i32
  }
  func.func @transform_1(%arg0: i32, %arg1: i32) -> (i32, i32) {
    %c0_i32 = arith.constant 0 : i32
    return %arg1, %arg0 : i32, i32
  }
  func.func @transform_2(%arg0: i32, %arg1: i32) -> (i32, i32) {
    %c0_i32 = arith.constant 0 : i32
    %c0_i32_0 = arith.constant 0 : i32
    return %c0_i32, %arg0 : i32, i32
  }
  func.func @transform_3(%arg0: i32, %arg1: i32) -> (i32, i32) {
    %c0_i32 = arith.constant 0 : i32
    %c0_i32_0 = arith.constant 0 : i32
    return %c0_i32, %arg0 : i32, i32
  }
}

</mosaic_0001>

<llo_original>
// kernel: tpu_custom_call.1
$region0: #{tpu_custom_call.1}
  #allocation0 [shape = 'u32[]', space=smem, size = 0x4, offset = 0x4, fixed_abs, tag = 'smem constant byte address 0x4 - core index']
  #allocation1 [shape = 'u32[144,128]{1,0:T(1,128)}', space=vmem, size = 0x12000, scoped, tag = 'internal scratch']
  %s0 = inlined_call_operand.hbm [shape: bf16[8,256], index: 0, kind: input, shape index: {}]
  %s1 = inlined_call_operand.hbm [shape: bf16[256,256], index: 1, kind: input, shape index: {}]
  %s2 = inlined_call_operand.vmem [shape: f32[1,256], index: 2, kind: input, shape index: {}]
  %s3 = inlined_call_operand.hbm [shape: f32[8,256], index: 3, kind: output, shape index: {}]
  %s4 = sld [smem:[#allocation0]]
  $region38: #{tpu_custom_call.1} parent=0
    _
  %s6 = ssub.s32 1, %s4
  %s7 = scalar_select 0, %s6, %s4
  $region1: #{tpu_custom_call.1} parent=0
    #allocation2 [shape = 'u8[4096]{0}', space=vmem, size = 0x1000, scoped, tag = 'input window, operand 0, single buffered']
    #allocation3 [shape = 's32[1]{0}', space=sflag, size = 0x4, scoped, tag = 'scoped memory for tpu_custom_call.1']
    #allocation4 [shape = 's32[1]{0}', space=sflag, size = 0x4, scoped, tag = 'scoped memory for tpu_custom_call.1']
    #allocation5 [shape = 'u8[131072]{0}', space=vmem, size = 0x20000, scoped, tag = 'input window, operand 1, single buffered']
    #allocation6 [shape = 's32[1]{0}', space=sflag, size = 0x4, scoped, tag = 'scoped memory for tpu_custom_call.1']
    #allocation7 [shape = 'u8[8192]{0}', space=vmem, size = 0x2000, scoped, tag = 'output window, operand 0, single buffered']
    %8 = vsyncpa [#allocation3], 0
    %9 = vsyncpa [#allocation6], 0
    %10 = vsyncpa [#allocation4], 0
    // Predicated region
    $region2: #{tpu_custom_call.1} parent=1 // pred_check
      _
    $region3: #{tpu_custom_call.1} parent=1 // pred_check_branch
      %12 = sbr.rel (0) target = $region5
    $region4: #{tpu_custom_call.1} parent=1 // pred_region
      %s14 = ssub.s32 128, 128
      %15 = vsyncadd [#allocation3], %s14
      %s17 = sshll.u32 [#allocation2], 4
      %s18 = int_to_ptr.vmem [resolvable:$true] %s17
      %20 = dma.hbm_to_vmem [thread:$0]  %s0, 128, %s18, [#allocation3]
    $region5: #{tpu_custom_call.1} parent=1 // pred_fallthru
      _
    // Predicated region
    $region6: #{tpu_custom_call.1} parent=1 // pred_check
      _
    $region7: #{tpu_custom_call.1} parent=1 // pred_check_branch
      %22 = sbr.rel (0) target = $region9
    $region8: #{tpu_custom_call.1} parent=1 // pred_region
      %s24 = ssub.s32 4096, 4096
      %25 = vsyncadd [#allocation6], %s24
      %s26 = sshll.u32 [#allocation5], 4
      %s27 = int_to_ptr.vmem [resolvable:$true] %s26
      %32 = dma.hbm_to_vmem [thread:$0]  %s1, 4096, %s27, [#allocation6], 128, 128, 8
    $region9: #{tpu_custom_call.1} parent=1 // pred_fallthru
      _
    // Predicated region
    $region10: #{tpu_custom_call.1} parent=1 // pred_check
      _
    $region11: #{tpu_custom_call.1} parent=1 // pred_check_branch
      %34 = sbr.rel (0) target = $region13
    $region12: #{tpu_custom_call.1} parent=1 // pred_region
      _
    $region13: #{tpu_custom_call.1} parent=1 // pred_fallthru
      _
    // Predicated region
    $region14: #{tpu_custom_call.1} parent=1 // pred_check
      _
    $region15: #{tpu_custom_call.1} parent=1 // pred_check_branch
      %36 = sbr.rel (0) target = $region17
    $region16: #{tpu_custom_call.1} parent=1 // pred_region
      %37 = dma.done [#allocation3], 128
    $region17: #{tpu_custom_call.1} parent=1 // pred_fallthru
      _
    // Predicated region
    $region18: #{tpu_custom_call.1} parent=1 // pred_check
      _
    $region19: #{tpu_custom_call.1} parent=1 // pred_check_branch
      %39 = sbr.rel (0) target = $region21
    $region20: #{tpu_custom_call.1} parent=1 // pred_region
      %40 = dma.done [#allocation6], 4096
    $region21: #{tpu_custom_call.1} parent=1 // pred_fallthru
      _
    %p41 = scmp.eq.s32.totalorder 0, 0
    // Predicated region
    $region22: #{tpu_custom_call.1} parent=1 // pred_check
      %p42 = pneg %p41
    $region23: #{tpu_custom_call.1} parent=1 // pred_check_branch
      %44 = sbr.rel (%p42) target = $region25
    $region24: #{tpu_custom_call.1} parent=1 // pred_region
      %45 = vst [vmem:[#allocation7] sm:$0xff] 0.0
      %46 = vst [vmem:[#allocation7 + $0x8] sm:$0xff] 0.0
    $region25: #{tpu_custom_call.1} parent=1 // pred_fallthru
      _
    %v47 = vld [vmem:[#allocation7] sm:$0xff]
    %v48 = vld [vmem:[#allocation7 + $0x8] sm:$0xff]
    %v49 = vld [vmem:[#allocation2] sm:$0xff]
    %v50 = vld [vmem:[#allocation5] sm:$0xff]
    %v51 = vld [vmem:[#allocation5 + $0x8] sm:$0xff]
    %v52 = vld [vmem:[#allocation5 + $0x10] sm:$0xff]
    %v53 = vld [vmem:[#allocation5 + $0x18] sm:$0xff]
    %v54 = vld [vmem:[#allocation5 + $0x20] sm:$0xff]
    %v55 = vld [vmem:[#allocation5 + $0x28] sm:$0xff]
    %v56 = vld [vmem:[#allocation5 + $0x30] sm:$0xff]
    %v57 = vld [vmem:[#allocation5 + $0x38] sm:$0xff]
    %v58 = vld [vmem:[#allocation5 + $0x40] sm:$0xff]
    %v59 = vld [vmem:[#allocation5 + $0x48] sm:$0xff]
    %v60 = vld [vmem:[#allocation5 + $0x50] sm:$0xff]
    %v61 = vld [vmem:[#allocation5 + $0x58] sm:$0xff]
    %v62 = vld [vmem:[#allocation5 + $0x60] sm:$0xff]
    %v63 = vld [vmem:[#allocation5 + $0x68] sm:$0xff]
    %v64 = vld [vmem:[#allocation5 + $0x70] sm:$0xff]
    %v65 = vld [vmem:[#allocation5 + $0x78] sm:$0xff]
    %v66 = vld [vmem:[#allocation5 + $0x80] sm:$0xff]
    %v67 = vld [vmem:[#allocation5 + $0x88] sm:$0xff]
    %v68 = vld [vmem:[#allocation5 + $0x90] sm:$0xff]
    %v69 = vld [vmem:[#allocation5 + $0x98] sm:$0xff]
    %v70 = vld [vmem:[#allocation5 + $0xa0] sm:$0xff]
    %v71 = vld [vmem:[#allocation5 + $0xa8] sm:$0xff]
    %v72 = vld [vmem:[#allocation5 + $0xb0] sm:$0xff]
    %v73 = vld [vmem:[#allocation5 + $0xb8] sm:$0xff]
    %v74 = vld [vmem:[#allocation5 + $0xc0] sm:$0xff]
    %v75 = vld [vmem:[#allocation5 + $0xc8] sm:$0xff]
    %v76 = vld [vmem:[#allocation5 + $0xd0] sm:$0xff]
    %v77 = vld [vmem:[#allocation5 + $0xd8] sm:$0xff]
    %v78 = vld [vmem:[#allocation5 + $0xe0] sm:$0xff]
    %v79 = vld [vmem:[#allocation5 + $0xe8] sm:$0xff]
    %v80 = vld [vmem:[#allocation5 + $0xf0] sm:$0xff]
    %v81 = vld [vmem:[#allocation5 + $0xf8] sm:$0xff]
    %v83 = vunpack.c.l.b16 %v49
    %v84 = vunpack.c.h.b16 %v49
    %v85 = vpack.c.b16 %v83, %v83
    %v86 = vpack.c.b16 %v84, %v84
    %v121 = vunpack.c.l.b16 %v50
    %v122 = vunpack.c.h.b16 %v50
    %v123 = vunpack.c.l.b16 %v51
    %v124 = vunpack.c.h.b16 %v51
    %v125 = vunpack.c.l.b16 %v52
    %v126 = vunpack.c.h.b16 %v52
    %v127 = vunpack.c.l.b16 %v53
    %v128 = vunpack.c.h.b16 %v53
    %v129 = vunpack.c.l.b16 %v54
    %v130 = vunpack.c.h.b16 %v54
    %v131 = vunpack.c.l.b16 %v55
    %v132 = vunpack.c.h.b16 %v55
    %v133 = vunpack.c.l.b16 %v56
    %v134 = vunpack.c.h.b16 %v56
    %v135 = vunpack.c.l.b16 %v57
    %v136 = vunpack.c.h.b16 %v57
    %v137 = vunpack.c.l.b16 %v58
    %v138 = vunpack.c.h.b16 %v58
    %v139 = vunpack.c.l.b16 %v59
    %v140 = vunpack.c.h.b16 %v59
    %v141 = vunpack.c.l.b16 %v60
    %v142 = vunpack.c.h.b16 %v60
    %v143 = vunpack.c.l.b16 %v61
    %v144 = vunpack.c.h.b16 %v61
    %v145 = vunpack.c.l.b16 %v62
    %v146 = vunpack.c.h.b16 %v62
    %v147 = vunpack.c.l.b16 %v63
    %v148 = vunpack.c.h.b16 %v63
    %v149 = vunpack.c.l.b16 %v64
    %v150 = vunpack.c.h.b16 %v64
    %v151 = vunpack.c.l.b16 %v65
    %v152 = vunpack.c.h.b16 %v65
    %v153 = vunpack.c.l.b16 %v66
    %v154 = vunpack.c.h.b16 %v66
    %v155 = vunpack.c.l.b16 %v67
    %v156 = vunpack.c.h.b16 %v67
    %v157 = vunpack.c.l.b16 %v68
    %v158 = vunpack.c.h.b16 %v68
    %v159 = vunpack.c.l.b16 %v69
    %v160 = vunpack.c.h.b16 %v69
    %v161 = vunpack.c.l.b16 %v70
    %v162 = vunpack.c.h.b16 %v70
    %v163 = vunpack.c.l.b16 %v71
    %v164 = vunpack.c.h.b16 %v71
    %v165 = vunpack.c.l.b16 %v72
    %v166 = vunpack.c.h.b16 %v72
    %v167 = vunpack.c.l.b16 %v73
    %v168 = vunpack.c.h.b16 %v73
    %v169 = vunpack.c.l.b16 %v74
    %v170 = vunpack.c.h.b16 %v74
    %v171 = vunpack.c.l.b16 %v75
    %v172 = vunpack.c.h.b16 %v75
    %v173 = vunpack.c.l.b16 %v76
    %v174 = vunpack.c.h.b16 %v76
    %v175 = vunpack.c.l.b16 %v77
    %v176 = vunpack.c.h.b16 %v77
    %v177 = vunpack.c.l.b16 %v78
    %v178 = vunpack.c.h.b16 %v78
    %v179 = vunpack.c.l.b16 %v79
    %v180 = vunpack.c.h.b16 %v79
    %v181 = vunpack.c.l.b16 %v80
    %v182 = vunpack.c.h.b16 %v80
    %v183 = vunpack.c.l.b16 %v81
    %v184 = vunpack.c.h.b16 %v81
    %v185 = vpack.c.b16 %v123, %v121
    %v186 = vpack.c.b16 %v124, %v122
    %v187 = vpack.c.b16 %v127, %v125
    %v188 = vpack.c.b16 %v128, %v126
    %v189 = vpack.c.b16 %v131, %v129
    %v190 = vpack.c.b16 %v132, %v130
    %v191 = vpack.c.b16 %v135, %v133
    %v192 = vpack.c.b16 %v136, %v134
    %v193 = vpack.c.b16 %v139, %v137
    %v194 = vpack.c.b16 %v140, %v138
    %v195 = vpack.c.b16 %v143, %v141
    %v196 = vpack.c.b16 %v144, %v142
    %v197 = vpack.c.b16 %v147, %v145
    %v198 = vpack.c.b16 %v148, %v146
    %v199 = vpack.c.b16 %v151, %v149
    %v200 = vpack.c.b16 %v152, %v150
    %v201 = vpack.c.b16 %v155, %v153
    %v202 = vpack.c.b16 %v156, %v154
    %v203 = vpack.c.b16 %v159, %v157
    %v204 = vpack.c.b16 %v160, %v158
    %v205 = vpack.c.b16 %v163, %v161
    %v206 = vpack.c.b16 %v164, %v162
    %v207 = vpack.c.b16 %v167, %v165
    %v208 = vpack.c.b16 %v168, %v166
    %v209 = vpack.c.b16 %v171, %v169
    %v210 = vpack.c.b16 %v172, %v170
    %v211 = vpack.c.b16 %v175, %v173
    %v212 = vpack.c.b16 %v176, %v174
    %v213 = vpack.c.b16 %v179, %v177
    %v214 = vpack.c.b16 %v180, %v178
    %v215 = vpack.c.b16 %v183, %v181
    %v216 = vpack.c.b16 %v184, %v182
    %249 = vmatprep.subr.bf16.mxu0 %v186
    %250 = vmatpush1.bf16.msra.mxu0 %v185
    %251 = vmatprep.subr.bf16.mxu0 %v188
    %252 = vmatpush1.bf16.msra.mxu0 %v187
    %253 = vmatprep.subr.bf16.mxu0 %v190
    %254 = vmatpush1.bf16.msra.mxu0 %v189
    %255 = vmatprep.subr.bf16.mxu0 %v192
    %256 = vmatpush1.bf16.msra.mxu0 %v191
    %257 = vmatprep.subr.bf16.mxu0 %v194
    %258 = vmatpush1.bf16.msra.mxu0 %v193
    %259 = vmatprep.subr.bf16.mxu0 %v196
    %260 = vmatpush1.bf16.msra.mxu0 %v195
    %261 = vmatprep.subr.bf16.mxu0 %v198
    %262 = vmatpush1.bf16.msra.mxu0 %v197
    %263 = vmatprep.subr.bf16.mxu0 %v200
    %264 = vmatpush1.bf16.msra.mxu0 %v199
    %265 = vmatprep.subr.bf16.mxu0 %v202
    %266 = vmatpush1.bf16.msra.mxu0 %v201
    %267 = vmatprep.subr.bf16.mxu0 %v204
    %268 = vmatpush1.bf16.msra.mxu0 %v203
    %269 = vmatprep.subr.bf16.mxu0 %v206
    %270 = vmatpush1.bf16.msra.mxu0 %v205
    %271 = vmatprep.subr.bf16.mxu0 %v208
    %272 = vmatpush1.bf16.msra.mxu0 %v207
    %273 = vmatprep.subr.bf16.mxu0 %v210
    %274 = vmatpush1.bf16.msra.mxu0 %v209
    %275 = vmatprep.subr.bf16.mxu0 %v212
    %276 = vmatpush1.bf16.msra.mxu0 %v211
    %277 = vmatprep.subr.bf16.mxu0 %v214
    %278 = vmatpush1.bf16.msra.mxu0 %v213
    %279 = vmatprep.subr.bf16.mxu0 %v216
    %280 = vmatpush1.bf16.msra.mxu0 %v215
    %281 = vmatprep.mubr.bf16.mxu0 %v86
    %282 = vmatmul.mubr.bf16.gmra.mrb[0].mxu0 %v85
    %v283 = vpop.f32.mrb[0].mxu0
    %v284 = vadd.f32 0.0, %v283
    %v285 = vpop.f32.mrb[0].mxu0
    %v286 = vadd.f32 0.0, %v285
    %v287 = vpop.f32.mrb[0].mxu0
    %v288 = vpop.f32.mrb[0].mxu0
    %289 = vdwg.mxu0
    %v290 = vadd.f32 %v47, %v284
    %v291 = vadd.f32 %v48, %v286
    %292 = vst [vmem:[#allocation7] sm:$0xff] %v290
    %293 = vst [vmem:[#allocation7 + $0x8] sm:$0xff] %v291
    // Predicated region
    $region26: #{tpu_custom_call.1} parent=1 // pred_check
      %p294 = pneg %p41
    $region27: #{tpu_custom_call.1} parent=1 // pred_check_branch
      %296 = sbr.rel (%p294) target = $region29
    $region28: #{tpu_custom_call.1} parent=1 // pred_region
      %v297 = vld [vmem:[#allocation7] sm:$0xff]
      %v298 = vld [vmem:[#allocation7 + $0x8] sm:$0xff]
      %v299 = vld [vmem:[%s2] sm:$0x3]
      %v301 = vlaneseq
      %v302 = vshrl.u32 %v301, 7
      %v303 = vsub.s32 0, %v302
      %v304 = vrot.slane %v299, %v303
      %v305 = vlaneseq
      %v306 = vshrl.u32 %v305, 7
      %v307 = vsub.s32 1, %v306
      %v308 = vrot.slane %v299, %v307
      %v311 = vadd.f32 %v297, %v304
      %v312 = vadd.f32 %v298, %v308
      %313 = vst [vmem:[#allocation7] sm:$0xff] %v311
      %314 = vst [vmem:[#allocation7 + $0x8] sm:$0xff] %v312
    $region29: #{tpu_custom_call.1} parent=1 // pred_fallthru
      _
    // Predicated region
    $region30: #{tpu_custom_call.1} parent=1 // pred_check
      _
    $region31: #{tpu_custom_call.1} parent=1 // pred_check_branch
      %316 = sbr.rel (0) target = $region33
    $region32: #{tpu_custom_call.1} parent=1 // pred_region
      %s318 = ssub.s32 256, 256
      %319 = vsyncadd [#allocation4], %s318
      %s321 = sshll.u32 [#allocation7], 4
      %s322 = int_to_ptr.vmem [resolvable:$true] %s321
      %324 = dma.vmem_to_hbm [thread:$0]  %s322, 256, %s3, [#allocation4]
    $region33: #{tpu_custom_call.1} parent=1 // pred_fallthru
      _
    // Predicated region
    $region34: #{tpu_custom_call.1} parent=1 // pred_check
      _
    $region35: #{tpu_custom_call.1} parent=1 // pred_check_branch
      %326 = sbr.rel (0) target = $region37
    $region36: #{tpu_custom_call.1} parent=1 // pred_region
      %327 = dma.done [#allocation4], 256
    $region37: #{tpu_custom_call.1} parent=1 // pred_fallthru
      _
    %328 = vsyncpa [#allocation3], 1
    %329 = vsyncpa [#allocation6], 1
    %330 = vsyncpa [#allocation4], 1

</llo_original>
